<compile_context>
chip_gen: v7x
topology: tpu7x:2x2x1
jax: 0.10.0
libtpu: 0.0.40
codegen_flags: <defaults>
</compile_context>

<pallas_src>
import jax
import jax.numpy as jnp
from jax.experimental import pallas as pl
from jax.experimental.pallas import tpu as pltpu


def critic_kernel(tq_ref, a_ref,
                  wa_ref, ba_ref,
                  ctab_ref, wca_ref,
                  wo_ref, bo_ref,
                  q_ref):
    # fc_a + ReLU -> (TB, 128): bf16 operands, f32 MXU accumulation.
    h_a = jnp.dot(a_ref[...], wa_ref[...],
                  preferred_element_type=jnp.float32) + ba_ref[...]
    h_a = jnp.maximum(h_a, 0.0).astype(jnp.bfloat16)

    # c-branch of fc_cat folded into a (4, 256) table (includes fc_cat bias):
    # gather the row for each batch element with a 4-way VPU select.
    tq = tq_ref[...]                                  # (TB, 1) int32
    c_part = ctab_ref[0:1, :]                         # (1, 256) f32
    for k in range(1, 4):
        c_part = jnp.where(tq == k, ctab_ref[k:k + 1, :], c_part)
    # c_part: (TB, 256) f32

    # Anchor half of fc_cat: (TB,128) @ (128,256), add folded c-branch, ReLU.
    h = jnp.maximum(
        c_part + jnp.dot(h_a, wca_ref[...], preferred_element_type=jnp.float32),
        0.0)

    # fc_out (256 -> 1) as VPU multiply + lane reduction (no 1-column MXU pass).
    q = jnp.sum(h * wo_ref[...], axis=-1, keepdims=True) + bo_ref[...]
    q_ref[...] = q.astype(q_ref.dtype)


def critic_forward(target_quadrant, anchor, params):
    """target_quadrant: (B,) int32 in [0,4); anchor: (B, anchor_dim) float32."""
    B, anchor_dim = anchor.shape

    # --- parameter-only precompute (tiny, batch-independent) -----------------
    # relu(eye(cdim)[:4][tq] @ ws + bs) == relu(ws[tq] + bs)
    hs_table = jnp.maximum(params["ws"][:4, :] + params["bs"], 0.0)     # (4, 128)
    hs_table = hs_table.astype(jnp.bfloat16)

    wc = params["wc"].astype(jnp.bfloat16)                              # (256, 256)
    # Fold the c-branch through the top half of fc_cat (plus fc_cat bias).
    ctab = jnp.dot(hs_table, wc[:128, :],
                   preferred_element_type=jnp.float32) + params["bc"]   # (4, 256) f32
    wc_a = wc[128:, :]                                                  # (128, 256) bf16

    wa = params["wa"].astype(jnp.bfloat16)                              # (anchor_dim, 128)
    ba = params["ba"].astype(jnp.float32)                               # (1, 128)
    wo = params["wo"].reshape(1, -1).astype(jnp.float32)                # (1, 256)
    bo = params["bo"].astype(jnp.float32)                               # (1, 1)

    # --- batch-dependent inputs ----------------------------------------------
    tq = target_quadrant.astype(jnp.int32).reshape(-1, 1)               # (B, 1)
    anchor_bf = anchor.astype(jnp.bfloat16)                             # (B, anchor_dim)

    # Batch tiling: sublane-aligned (multiple of 16 for bf16 packing) tile size,
    # batch padded up to a whole number of tiles.
    TB = min(256, ((B + 15) // 16) * 16)
    Bp = ((B + TB - 1) // TB) * TB
    if Bp != B:
        pad = Bp - B
        tq = jnp.pad(tq, ((0, pad), (0, 0)))
        anchor_bf = jnp.pad(anchor_bf, ((0, pad), (0, 0)))

    grid = (Bp // TB,)
    batch_spec = lambda d: pl.BlockSpec((TB, d), lambda i: (i, 0))
    const_spec = lambda shape: pl.BlockSpec(shape, lambda i: (0, 0))

    q_pad = pl.pallas_call(
        critic_kernel,
        out_shape=jax.ShapeDtypeStruct((Bp, 1), jnp.float32),
        grid=grid,
        in_specs=[
            batch_spec(1),               # target quadrant indices
            batch_spec(anchor_dim),      # anchor
            const_spec(wa.shape), const_spec(ba.shape),
            const_spec(ctab.shape), const_spec(wc_a.shape),
            const_spec(wo.shape), const_spec(bo.shape),
        ],
        out_specs=pl.BlockSpec((TB, 1), lambda i: (i, 0)),
        compiler_params=pltpu.CompilerParams(
            dimension_semantics=("parallel",)),
    )(tq, anchor_bf, wa, ba, ctab, wc_a, wo, bo)

    return q_pad[:B]


def init_params(key, cdim, anchor_dim):
    """Deterministic synthetic parameters matching CriticClass.__init__ shapes.
    PyTorch Linear weights are (out,in); we store them transposed as (in,out)."""
    ks = jax.random.split(key, 8)
    scale = 0.1
    params = {
        "embed": jnp.eye(cdim, dtype=jnp.float32)[:4],                        # (4, cdim)
        "ws": jax.random.normal(ks[0], (cdim, 128), jnp.float32) * scale,     # fc_s
        "bs": jax.random.normal(ks[1], (1, 128), jnp.float32) * scale,
        "wa": jax.random.normal(ks[2], (anchor_dim, 128), jnp.float32) * scale,  # fc_a
        "ba": jax.random.normal(ks[3], (1, 128), jnp.float32) * scale,
        "wc": jax.random.normal(ks[4], (256, 256), jnp.float32) * scale,      # fc_cat
        "bc": jax.random.normal(ks[5], (1, 256), jnp.float32) * scale,
        "wo": jax.random.normal(ks[6], (256, 1), jnp.float32) * scale,        # fc_out
        "bo": jax.random.normal(ks[7], (1, 1), jnp.float32) * scale,
    }
    return params


def reference_forward(target_quadrant, anchor, params):
    """Mirrors the module semantics with the same bf16 weight/activation casts
    the kernel uses (f32 accumulation), for a tight numerical comparison."""
    c_emb = jnp.take(params["embed"], target_quadrant, axis=0)
    h_s = jax.nn.relu(c_emb @ params["ws"] + params["bs"]).astype(jnp.bfloat16)
    wa = params["wa"].astype(jnp.bfloat16)
    wc = params["wc"].astype(jnp.bfloat16)
    h_a = jax.nn.relu(
        jnp.dot(anchor.astype(jnp.bfloat16), wa,
                preferred_element_type=jnp.float32) + params["ba"]).astype(jnp.bfloat16)
    ac = jnp.concatenate([h_s, h_a], axis=1)
    h = jax.nn.relu(
        jnp.dot(ac, wc, preferred_element_type=jnp.float32) + params["bc"])
    return h @ params["wo"] + params["bo"]


if __name__ == "__main__":
    key = jax.random.PRNGKey(0)
    k_p, k_q, k_a = jax.random.split(key, 3)

    B, cdim, anchor_dim = 4, 4, 8

    params = init_params(k_p, cdim, anchor_dim)
    target_quadrant = jax.random.randint(k_q, (B,), 0, 4, dtype=jnp.int32)
    anchor = jax.random.normal(k_a, (B, anchor_dim), jnp.float32)

    q_value = critic_forward(target_quadrant, anchor, params)
    q_value = jax.block_until_ready(q_value)

    q_ref = reference_forward(target_quadrant, anchor, params)
    assert q_value.shape == (B, 1)
    assert jnp.allclose(q_value, q_ref, atol=5e-3, rtol=5e-3), (q_value, q_ref)

    print("KERNEL_OK")
</pallas_src>

<mosaic_0001>
module attributes {stable_mosaic.version = 11 : i64} {
  func.func @critic_kernel(%arg0: i32, %arg1: memref<16x1xi32, #tpu.memory_space<vmem>>, %arg2: memref<16x8xbf16, #tpu.memory_space<vmem>>, %arg3: memref<8x128xbf16, #tpu.memory_space<vmem>>, %arg4: memref<1x128xf32, #tpu.memory_space<vmem>>, %arg5: memref<4x256xf32, #tpu.memory_space<vmem>>, %arg6: memref<128x256xbf16, #tpu.memory_space<vmem>>, %arg7: memref<1x256xf32, #tpu.memory_space<vmem>>, %arg8: memref<1x1xf32, #tpu.memory_space<vmem>>, %arg9: memref<16x1xf32, #tpu.memory_space<vmem>>) attributes {dimension_semantics = [#tpu.dimension_semantics<parallel>], iteration_bounds = array<i64: 1>, scalar_prefetch = 0 : i64, scratch_operands = 0 : i64, tpu.core_type = #tpu.core_type<tc>, window_params = [{transform_indices = @transform_0, window_bounds = array<i64: 16, 1>}, {transform_indices = @transform_1, window_bounds = array<i64: 16, 8>}, {pipeline_mode = #tpu.pipeline_mode<synchronous>, transform_indices = @transform_2, window_bounds = array<i64: 8, 128>}, {pipeline_mode = #tpu.pipeline_mode<synchronous>, transform_indices = @transform_3, window_bounds = array<i64: 1, 128>}, {pipeline_mode = #tpu.pipeline_mode<synchronous>, transform_indices = @transform_4, window_bounds = array<i64: 4, 256>}, {pipeline_mode = #tpu.pipeline_mode<synchronous>, transform_indices = @transform_5, window_bounds = array<i64: 128, 256>}, {pipeline_mode = #tpu.pipeline_mode<synchronous>, transform_indices = @transform_6, window_bounds = array<i64: 1, 256>}, {pipeline_mode = #tpu.pipeline_mode<synchronous>, transform_indices = @transform_7, window_bounds = array<i64: 1, 1>}, {transform_indices = @transform_8, window_bounds = array<i64: 16, 1>}]} {
    %c0 = arith.constant 0 : index
    %c0_0 = arith.constant 0 : index
    %0 = vector.load %arg2[%c0, %c0_0] : memref<16x8xbf16, #tpu.memory_space<vmem>>, vector<16x8xbf16>
    %c0_1 = arith.constant 0 : index
    %c0_2 = arith.constant 0 : index
    %1 = vector.load %arg3[%c0_1, %c0_2] : memref<8x128xbf16, #tpu.memory_space<vmem>>, vector<8x128xbf16>
    %cst = arith.constant dense<0.000000e+00> : vector<16x128xf32>
    %2 = tpu.matmul %0, %1, %cst {dimension_numbers = #tpu.dot_dimension_numbers<[1], [0], [0], [1], [0, 0, 1, 1], [], []>} : vector<16x8xbf16>, vector<8x128xbf16>, vector<16x128xf32> -> vector<16x128xf32>
    %c0_3 = arith.constant 0 : index
    %c0_4 = arith.constant 0 : index
    %3 = vector.load %arg4[%c0_3, %c0_4] : memref<1x128xf32, #tpu.memory_space<vmem>>, vector<1x128xf32>
    %4 = vector.broadcast %3 : vector<1x128xf32> to vector<16x128xf32>
    %5 = arith.addf %2, %4 : vector<16x128xf32>
    %cst_5 = arith.constant 0.000000e+00 : f32
    %6 = vector.broadcast %cst_5 : f32 to vector<16x128xf32>
    %7 = arith.maximumf %5, %6 : vector<16x128xf32>
    %8 = arith.truncf %7 : vector<16x128xf32> to vector<16x128xbf16>
    %c0_6 = arith.constant 0 : index
    %c0_7 = arith.constant 0 : index
    %9 = vector.load %arg1[%c0_6, %c0_7] : memref<16x1xi32, #tpu.memory_space<vmem>>, vector<16x1xi32>
    %c0_8 = arith.constant 0 : index
    %c0_9 = arith.constant 0 : index
    %10 = vector.load %arg5[%c0_8, %c0_9] : memref<4x256xf32, #tpu.memory_space<vmem>>, vector<1x256xf32>
    %c1_i32 = arith.constant 1 : i32
    %11 = vector.broadcast %c1_i32 : i32 to vector<16x1xi32>
    %12 = arith.cmpi eq, %9, %11 : vector<16x1xi32>
    %c1 = arith.constant 1 : index
    %c0_10 = arith.constant 0 : index
    %13 = vector.load %arg5[%c1, %c0_10] : memref<4x256xf32, #tpu.memory_space<vmem>>, vector<1x256xf32>
    %14 = vector.shape_cast %12 : vector<16x1xi1> to vector<16x1xi1>
    %15 = vector.broadcast %14 : vector<16x1xi1> to vector<16x256xi1>
    %16 = vector.shape_cast %13 : vector<1x256xf32> to vector<1x256xf32>
    %17 = vector.broadcast %16 : vector<1x256xf32> to vector<16x256xf32>
    %18 = vector.shape_cast %10 : vector<1x256xf32> to vector<1x256xf32>
    %19 = vector.broadcast %18 : vector<1x256xf32> to vector<16x256xf32>
    %20 = arith.select %15, %17, %19 : vector<16x256xi1>, vector<16x256xf32>
    %c2_i32 = arith.constant 2 : i32
    %21 = vector.broadcast %c2_i32 : i32 to vector<16x1xi32>
    %22 = arith.cmpi eq, %9, %21 : vector<16x1xi32>
    %c2 = arith.constant 2 : index
    %c0_11 = arith.constant 0 : index
    %23 = vector.load %arg5[%c2, %c0_11] : memref<4x256xf32, #tpu.memory_space<vmem>>, vector<1x256xf32>
    %24 = vector.shape_cast %22 : vector<16x1xi1> to vector<16x1xi1>
    %25 = vector.broadcast %24 : vector<16x1xi1> to vector<16x256xi1>
    %26 = vector.shape_cast %23 : vector<1x256xf32> to vector<1x256xf32>
    %27 = vector.broadcast %26 : vector<1x256xf32> to vector<16x256xf32>
    %28 = arith.select %25, %27, %20 : vector<16x256xi1>, vector<16x256xf32>
    %c3_i32 = arith.constant 3 : i32
    %29 = vector.broadcast %c3_i32 : i32 to vector<16x1xi32>
    %30 = arith.cmpi eq, %9, %29 : vector<16x1xi32>
    %c3 = arith.constant 3 : index
    %c0_12 = arith.constant 0 : index
    %31 = vector.load %arg5[%c3, %c0_12] : memref<4x256xf32, #tpu.memory_space<vmem>>, vector<1x256xf32>
    %32 = vector.shape_cast %30 : vector<16x1xi1> to vector<16x1xi1>
    %33 = vector.broadcast %32 : vector<16x1xi1> to vector<16x256xi1>
    %34 = vector.shape_cast %31 : vector<1x256xf32> to vector<1x256xf32>
    %35 = vector.broadcast %34 : vector<1x256xf32> to vector<16x256xf32>
    %36 = arith.select %33, %35, %28 : vector<16x256xi1>, vector<16x256xf32>
    %c0_13 = arith.constant 0 : index
    %c0_14 = arith.constant 0 : index
    %37 = vector.load %arg6[%c0_13, %c0_14] : memref<128x256xbf16, #tpu.memory_space<vmem>>, vector<128x256xbf16>
    %cst_15 = arith.constant dense<0.000000e+00> : vector<16x256xf32>
    %38 = tpu.matmul %8, %37, %cst_15 {dimension_numbers = #tpu.dot_dimension_numbers<[1], [0], [0], [1], [0, 0, 1, 1], [], []>} : vector<16x128xbf16>, vector<128x256xbf16>, vector<16x256xf32> -> vector<16x256xf32>
    %39 = arith.addf %36, %38 : vector<16x256xf32>
    %cst_16 = arith.constant 0.000000e+00 : f32
    %40 = vector.broadcast %cst_16 : f32 to vector<16x256xf32>
    %41 = arith.maximumf %39, %40 : vector<16x256xf32>
    %c0_17 = arith.constant 0 : index
    %c0_18 = arith.constant 0 : index
    %42 = vector.load %arg7[%c0_17, %c0_18] : memref<1x256xf32, #tpu.memory_space<vmem>>, vector<1x256xf32>
    %43 = vector.broadcast %42 : vector<1x256xf32> to vector<16x256xf32>
    %44 = arith.mulf %41, %43 : vector<16x256xf32>
    %cst_19 = arith.constant dense<0.000000e+00> : vector<16xf32>
    %45 = vector.multi_reduction <add>, %44, %cst_19 [1] : vector<16x256xf32> to vector<16xf32>
    %46 = vector.shape_cast %45 : vector<16xf32> to vector<16x1xf32>
    %c0_20 = arith.constant 0 : index
    %c0_21 = arith.constant 0 : index
    %47 = vector.load %arg8[%c0_20, %c0_21] : memref<1x1xf32, #tpu.memory_space<vmem>>, vector<1x1xf32>
    %48 = vector.broadcast %47 : vector<1x1xf32> to vector<16x1xf32>
    %49 = arith.addf %46, %48 : vector<16x1xf32>
    %c0_22 = arith.constant 0 : index
    %c0_23 = arith.constant 0 : index
    %50 = vector.load %arg9[%c0_22, %c0_23] : memref<16x1xf32, #tpu.memory_space<vmem>>, vector<16x1xf32>
    tpu.vector_store %arg9[%c0_22, %c0_23], %49 {strides = array<i32>} : memref<16x1xf32, #tpu.memory_space<vmem>>, vector<16x1xf32>,
    return
  }
  func.func @transform_0(%arg0: i32) -> (i32, i32) {
    %c0_i32 = arith.constant 0 : i32
    %c0_i32_0 = arith.constant 0 : i32
    return %arg0, %c0_i32 : i32, i32
  }
  func.func @transform_1(%arg0: i32) -> (i32, i32) {
    %c0_i32 = arith.constant 0 : i32
    %c0_i32_0 = arith.constant 0 : i32
    return %arg0, %c0_i32 : i32, i32
  }
  func.func @transform_2(%arg0: i32) -> (i32, i32) {
    %c0_i32 = arith.constant 0 : i32
    %c0_i32_0 = arith.constant 0 : i32
    %c0_i32_1 = arith.constant 0 : i32
    return %c0_i32, %c0_i32_0 : i32, i32
  }
  func.func @transform_3(%arg0: i32) -> (i32, i32) {
    %c0_i32 = arith.constant 0 : i32
    %c0_i32_0 = arith.constant 0 : i32
    %c0_i32_1 = arith.constant 0 : i32
    return %c0_i32, %c0_i32_0 : i32, i32
  }
  func.func @transform_4(%arg0: i32) -> (i32, i32) {
    %c0_i32 = arith.constant 0 : i32
    %c0_i32_0 = arith.constant 0 : i32
    %c0_i32_1 = arith.constant 0 : i32
    return %c0_i32, %c0_i32_0 : i32, i32
  }
  func.func @transform_5(%arg0: i32) -> (i32, i32) {
    %c0_i32 = arith.constant 0 : i32
    %c0_i32_0 = arith.constant 0 : i32
    %c0_i32_1 = arith.constant 0 : i32
    return %c0_i32, %c0_i32_0 : i32, i32
  }
  func.func @transform_6(%arg0: i32) -> (i32, i32) {
    %c0_i32 = arith.constant 0 : i32
    %c0_i32_0 = arith.constant 0 : i32
    %c0_i32_1 = arith.constant 0 : i32
    return %c0_i32, %c0_i32_0 : i32, i32
  }
  func.func @transform_7(%arg0: i32) -> (i32, i32) {
    %c0_i32 = arith.constant 0 : i32
    %c0_i32_0 = arith.constant 0 : i32
    %c0_i32_1 = arith.constant 0 : i32
    return %c0_i32, %c0_i32_0 : i32, i32
  }
  func.func @transform_8(%arg0: i32) -> (i32, i32) {
    %c0_i32 = arith.constant 0 : i32
    %c0_i32_0 = arith.constant 0 : i32
    return %arg0, %c0_i32 : i32, i32
  }
}

</mosaic_0001>

<llo_original>
// kernel: tpu_custom_call.1
$region0: #{tpu_custom_call.1}
  #allocation0 [shape = 'u32[]', space=smem, size = 0x4, offset = 0x4, fixed_abs, tag = 'smem constant byte address 0x4 - core index']
  #allocation1 [shape = 'u32[144,128]{1,0:T(1,128)}', space=vmem, size = 0x12000, scoped, tag = 'internal scratch']
  #allocation2 [shape = 'f32[1,1]{1,0:T(1,128)S(1)}', space=vmem, size = 0x200, scoped, tag = 'scoped memory for tpu_custom_call.1']
  %s0 = inlined_call_operand.vmem [shape: s32[16,1], index: 0, kind: input, shape index: {}]
  %s1 = inlined_call_operand.vmem [shape: bf16[16,8], index: 1, kind: input, shape index: {}]
  %s2 = inlined_call_operand.vmem [shape: bf16[8,128], index: 2, kind: input, shape index: {}]
  %s3 = inlined_call_operand.vmem [shape: f32[1,128], index: 3, kind: input, shape index: {}]
  %s4 = inlined_call_operand.vmem [shape: f32[4,256], index: 4, kind: input, shape index: {}]
  %s5 = inlined_call_operand.hbm [shape: bf16[128,256], index: 5, kind: input, shape index: {}]
  %s6 = inlined_call_operand.vmem [shape: f32[1,256], index: 6, kind: input, shape index: {}]
  %s7 = inlined_call_operand.<no memory space> [shape: f32[1,1], index: 7, kind: input, shape index: {}]
  %s8 = inlined_call_operand.vmem [shape: f32[16,1], index: 8, kind: output, shape index: {}]
  %s9 = sld [smem:[#allocation0]]
  $region46: #{tpu_custom_call.1} parent=0
    _
  %s11 = ssub.s32 1, %s9
  %s12 = scalar_select 0, %s11, %s9
  %v13 = vstv %s7
  %14 = vst [vmem:[#allocation2] sm:$0x1] %v13
  $region1: #{tpu_custom_call.1} parent=0
    #allocation3 [shape = 'u8[65536]{0}', space=vmem, size = 0x10000, scoped, tag = 'input window, operand 5, single buffered']
    #allocation4 [shape = 's32[1]{0}', space=sflag, size = 0x4, scoped, tag = 'scoped memory for tpu_custom_call.1']
    %15 = vsyncpa [#allocation4], 0
    // Predicated region
    $region2: #{tpu_custom_call.1} parent=1 // pred_check
      _
    $region3: #{tpu_custom_call.1} parent=1 // pred_check_branch
      %17 = sbr.rel (0) target = $region5
    $region4: #{tpu_custom_call.1} parent=1 // pred_region
      _
    $region5: #{tpu_custom_call.1} parent=1 // pred_fallthru
      _
    // Predicated region
    $region6: #{tpu_custom_call.1} parent=1 // pred_check
      _
    $region7: #{tpu_custom_call.1} parent=1 // pred_check_branch
      %19 = sbr.rel (0) target = $region9
    $region8: #{tpu_custom_call.1} parent=1 // pred_region
      _
    $region9: #{tpu_custom_call.1} parent=1 // pred_fallthru
      _
    // Predicated region
    $region10: #{tpu_custom_call.1} parent=1 // pred_check
      _
    $region11: #{tpu_custom_call.1} parent=1 // pred_check_branch
      %21 = sbr.rel (0) target = $region13
    $region12: #{tpu_custom_call.1} parent=1 // pred_region
      _
    $region13: #{tpu_custom_call.1} parent=1 // pred_fallthru
      _
    // Predicated region
    $region14: #{tpu_custom_call.1} parent=1 // pred_check
      _
    $region15: #{tpu_custom_call.1} parent=1 // pred_check_branch
      %23 = sbr.rel (0) target = $region17
    $region16: #{tpu_custom_call.1} parent=1 // pred_region
      _
    $region17: #{tpu_custom_call.1} parent=1 // pred_fallthru
      _
    // Predicated region
    $region18: #{tpu_custom_call.1} parent=1 // pred_check
      _
    $region19: #{tpu_custom_call.1} parent=1 // pred_check_branch
      %25 = sbr.rel (0) target = $region21
    $region20: #{tpu_custom_call.1} parent=1 // pred_region
      _
    $region21: #{tpu_custom_call.1} parent=1 // pred_fallthru
      _
    // Predicated region
    $region22: #{tpu_custom_call.1} parent=1 // pred_check
      _
    $region23: #{tpu_custom_call.1} parent=1 // pred_check_branch
      %27 = sbr.rel (0) target = $region25
    $region24: #{tpu_custom_call.1} parent=1 // pred_region
      %s29 = ssub.s32 2048, 2048
      %30 = vsyncadd [#allocation4], %s29
      %s31 = sshll.u32 [#allocation3], 4
      %s32 = int_to_ptr.vmem [resolvable:$true] %s31
      %37 = dma.hbm_to_vmem [thread:$0]  %s5, 2048, %s32, [#allocation4], 128, 128, 8
    $region25: #{tpu_custom_call.1} parent=1 // pred_fallthru
      _
    // Predicated region
    $region26: #{tpu_custom_call.1} parent=1 // pred_check
      _
    $region27: #{tpu_custom_call.1} parent=1 // pred_check_branch
      %39 = sbr.rel (0) target = $region29
    $region28: #{tpu_custom_call.1} parent=1 // pred_region
      _
    $region29: #{tpu_custom_call.1} parent=1 // pred_fallthru
      _
    // Predicated region
    $region30: #{tpu_custom_call.1} parent=1 // pred_check
      _
    $region31: #{tpu_custom_call.1} parent=1 // pred_check_branch
      %41 = sbr.rel (0) target = $region33
    $region32: #{tpu_custom_call.1} parent=1 // pred_region
      _
    $region33: #{tpu_custom_call.1} parent=1 // pred_fallthru
      _
    // Predicated region
    $region34: #{tpu_custom_call.1} parent=1 // pred_check
      _
    $region35: #{tpu_custom_call.1} parent=1 // pred_check_branch
      %43 = sbr.rel (0) target = $region37
    $region36: #{tpu_custom_call.1} parent=1 // pred_region
      %44 = dma.done [#allocation4], 2048
    $region37: #{tpu_custom_call.1} parent=1 // pred_fallthru
      _
    %v46 = vld [vmem:[%s1] sm:$0xf]
    %v47 = vld [vmem:[%s1 + $0x4] sm:$0xf]
    %v48 = vld [vmem:[%s2] sm:$0xf]
    %v49 = vld [vmem:[%s3] sm:$0x1]
    %v51 = vlaneseq
    %v52 = vshrl.u32 %v51, 7
    %v53 = vsub.s32 0, %v52
    %v54 = vrot.slane %v49, %v53
    %v58 = vunpack.c.l.b16 %v46
    %v59 = vunpack.c.l.b16 %v47
    %v60 = vpack.c.b16 %v59, %v58
    %vm61 = vcmask 64512
    %v63 = vsel %vm61, %v60, 0
    %vm65 = vcmask 1043456
    %v67 = vsel %vm65, %v48, 0
    %69 = vmatprep.subr.bf16.mxu0 0
    %70 = vmatpush1.bf16.msra.mxu0 %v67
    %71 = vmatprep.subr.bf16.mxu0 0
    %72 = vmatpush1.bf16.msra.mxu0 0
    %73 = vmatprep.subr.bf16.mxu0 0
    %74 = vmatpush1.bf16.msra.mxu0 0
    %75 = vmatprep.subr.bf16.mxu0 0
    %76 = vmatpush1.bf16.msra.mxu0 0
    %77 = vmatprep.subr.bf16.mxu0 0
    %78 = vmatpush1.bf16.msra.mxu0 0
    %79 = vmatprep.subr.bf16.mxu0 0
    %80 = vmatpush1.bf16.msra.mxu0 0
    %81 = vmatprep.subr.bf16.mxu0 0
    %82 = vmatpush1.bf16.msra.mxu0 0
    %83 = vmatprep.subr.bf16.mxu0 0
    %84 = vmatpush1.bf16.msra.mxu0 0
    %85 = vmatprep.subr.bf16.mxu0 0
    %86 = vmatpush1.bf16.msra.mxu0 0
    %87 = vmatprep.subr.bf16.mxu0 0
    %88 = vmatpush1.bf16.msra.mxu0 0
    %89 = vmatprep.subr.bf16.mxu0 0
    %90 = vmatpush1.bf16.msra.mxu0 0
    %91 = vmatprep.subr.bf16.mxu0 0
    %92 = vmatpush1.bf16.msra.mxu0 0
    %93 = vmatprep.subr.bf16.mxu0 0
    %94 = vmatpush1.bf16.msra.mxu0 0
    %95 = vmatprep.subr.bf16.mxu0 0
    %96 = vmatpush1.bf16.msra.mxu0 0
    %97 = vmatprep.subr.bf16.mxu0 0
    %98 = vmatpush1.bf16.msra.mxu0 0
    %99 = vmatprep.subr.bf16.mxu0 0
    %100 = vmatpush1.bf16.msra.mxu0 0
    %101 = vmatprep.mubr.bf16.mxu0 0
    %102 = vmatmul.mubr.bf16.gmra.mrb[0].mxu0 %v63
    %v103 = vpop.f32.mrb[0].mxu0
    %v104 = vadd.f32 %v54, %v103
    %v105 = vpop.f32.mrb[0].mxu0
    %v106 = vpop.f32.mrb[0].mxu0
    %v107 = vadd.f32 %v54, %v106
    %v108 = vpop.f32.mrb[0].mxu0
    %109 = vdwg.mxu0
    %v110 = vmax.f32 %v104, 0.0
    %v111 = vmax.f32 %v107, 0.0
    %v112 = vpack.c.bf16 %v111, %v110
    %v113 = vld [vmem:[%s0] sm:$0xff]
    %v114 = vld [vmem:[%s0 + $0x8] sm:$0xff]
    %v115 = vld [vmem:[%s4] ss:$4 sm:$0x3]
    %vm116 = vcmp.eq.s32.totalorder %v113, 1
    %vm117 = vcmp.eq.s32.totalorder %v114, 1
    %s118 = scalar_lea.vmem %s4, 1
    %v119 = vld [vmem:[%s118] ss:$4 sm:$0x3]
    %v120 = vsel %vm116, 1, 0
    %v121 = vsel %vm117, 1, 0
    %122 = vset.pattern.permute.xlu0 0
    %123 = vperm.xlu0 %122, %v120
    %v124 = vpop.permute.xlu0 %123
    %125 = vset.pattern.permute.xlu0 0
    %126 = vperm.xlu0 %125, %v121
    %v127 = vpop.permute.xlu0 %126
    %vm128 = vcmp.eq.s32.totalorder %v124, 1
    %vm129 = vcmp.eq.s32.totalorder %v127, 1
    %v131 = vlaneseq
    %v132 = vshrl.u32 %v131, 7
    %v133 = vsub.s32 0, %v132
    %v134 = vrot.slane %v119, %v133
    %v135 = vlaneseq
    %v136 = vshrl.u32 %v135, 7
    %v137 = vsub.s32 1, %v136
    %v138 = vrot.slane %v119, %v137
    %v142 = vlaneseq
    %v143 = vshrl.u32 %v142, 7
    %v144 = vsub.s32 0, %v143
    %v145 = vrot.slane %v115, %v144
    %v146 = vlaneseq
    %v147 = vshrl.u32 %v146, 7
    %v148 = vsub.s32 1, %v147
    %v149 = vrot.slane %v115, %v148
    %v152 = vsel %vm128, %v134, %v145
    %v153 = vsel %vm128, %v138, %v149
    %v154 = vsel %vm129, %v134, %v145
    %v155 = vsel %vm129, %v138, %v149
    %vm156 = vcmp.eq.s32.totalorder %v113, 2
    %vm157 = vcmp.eq.s32.totalorder %v114, 2
    %s158 = scalar_lea.vmem %s4, 2
    %v159 = vld [vmem:[%s158] ss:$4 sm:$0x3]
    %v160 = vsel %vm156, 1, 0
    %v161 = vsel %vm157, 1, 0
    %162 = vset.pattern.permute.xlu0 0
    %163 = vperm.xlu0 %162, %v160
    %v164 = vpop.permute.xlu0 %163
    %165 = vset.pattern.permute.xlu0 0
    %166 = vperm.xlu0 %165, %v161
    %v167 = vpop.permute.xlu0 %166
    %vm168 = vcmp.eq.s32.totalorder %v164, 1
    %vm169 = vcmp.eq.s32.totalorder %v167, 1
    %v171 = vlaneseq
    %v172 = vshrl.u32 %v171, 7
    %v173 = vsub.s32 0, %v172
    %v174 = vrot.slane %v159, %v173
    %v175 = vlaneseq
    %v176 = vshrl.u32 %v175, 7
    %v177 = vsub.s32 1, %v176
    %v178 = vrot.slane %v159, %v177
    %v181 = vsel %vm168, %v174, %v152
    %v182 = vsel %vm168, %v178, %v153
    %v183 = vsel %vm169, %v174, %v154
    %v184 = vsel %vm169, %v178, %v155
    %vm185 = vcmp.eq.s32.totalorder %v113, 3
    %vm186 = vcmp.eq.s32.totalorder %v114, 3
    %s187 = scalar_lea.vmem %s4, 3
    %v188 = vld [vmem:[%s187] ss:$4 sm:$0x3]
    %v189 = vsel %vm185, 1, 0
    %v190 = vsel %vm186, 1, 0
    %191 = vset.pattern.permute.xlu0 0
    %192 = vperm.xlu0 %191, %v189
    %v193 = vpop.permute.xlu0 %192
    %194 = vset.pattern.permute.xlu0 0
    %195 = vperm.xlu0 %194, %v190
    %v196 = vpop.permute.xlu0 %195
    %vm197 = vcmp.eq.s32.totalorder %v193, 1
    %vm198 = vcmp.eq.s32.totalorder %v196, 1
    %v200 = vlaneseq
    %v201 = vshrl.u32 %v200, 7
    %v202 = vsub.s32 0, %v201
    %v203 = vrot.slane %v188, %v202
    %v204 = vlaneseq
    %v205 = vshrl.u32 %v204, 7
    %v206 = vsub.s32 1, %v205
    %v207 = vrot.slane %v188, %v206
    %v210 = vsel %vm197, %v203, %v181
    %v211 = vsel %vm197, %v207, %v182
    %v212 = vsel %vm198, %v203, %v183
    %v213 = vsel %vm198, %v207, %v184
    %v214 = vld [vmem:[#allocation3] sm:$0xff]
    %v215 = vld [vmem:[#allocation3 + $0x8] sm:$0xff]
    %v216 = vld [vmem:[#allocation3 + $0x10] sm:$0xff]
    %v217 = vld [vmem:[#allocation3 + $0x18] sm:$0xff]
    %v218 = vld [vmem:[#allocation3 + $0x20] sm:$0xff]
    %v219 = vld [vmem:[#allocation3 + $0x28] sm:$0xff]
    %v220 = vld [vmem:[#allocation3 + $0x30] sm:$0xff]
    %v221 = vld [vmem:[#allocation3 + $0x38] sm:$0xff]
    %v222 = vld [vmem:[#allocation3 + $0x40] sm:$0xff]
    %v223 = vld [vmem:[#allocation3 + $0x48] sm:$0xff]
    %v224 = vld [vmem:[#allocation3 + $0x50] sm:$0xff]
    %v225 = vld [vmem:[#allocation3 + $0x58] sm:$0xff]
    %v226 = vld [vmem:[#allocation3 + $0x60] sm:$0xff]
    %v227 = vld [vmem:[#allocation3 + $0x68] sm:$0xff]
    %v228 = vld [vmem:[#allocation3 + $0x70] sm:$0xff]
    %v229 = vld [vmem:[#allocation3 + $0x78] sm:$0xff]
    %v246 = vunpack.c.l.b16 %v214
    %v247 = vunpack.c.h.b16 %v214
    %v248 = vunpack.c.l.b16 %v215
    %v249 = vunpack.c.h.b16 %v215
    %v250 = vunpack.c.l.b16 %v216
    %v251 = vunpack.c.h.b16 %v216
    %v252 = vunpack.c.l.b16 %v217
    %v253 = vunpack.c.h.b16 %v217
    %v254 = vunpack.c.l.b16 %v218
    %v255 = vunpack.c.h.b16 %v218
    %v256 = vunpack.c.l.b16 %v219
    %v257 = vunpack.c.h.b16 %v219
    %v258 = vunpack.c.l.b16 %v220
    %v259 = vunpack.c.h.b16 %v220
    %v260 = vunpack.c.l.b16 %v221
    %v261 = vunpack.c.h.b16 %v221
    %v262 = vunpack.c.l.b16 %v222
    %v263 = vunpack.c.h.b16 %v222
    %v264 = vunpack.c.l.b16 %v223
    %v265 = vunpack.c.h.b16 %v223
    %v266 = vunpack.c.l.b16 %v224
    %v267 = vunpack.c.h.b16 %v224
    %v268 = vunpack.c.l.b16 %v225
    %v269 = vunpack.c.h.b16 %v225
    %v270 = vunpack.c.l.b16 %v226
    %v271 = vunpack.c.h.b16 %v226
    %v272 = vunpack.c.l.b16 %v227
    %v273 = vunpack.c.h.b16 %v227
    %v274 = vunpack.c.l.b16 %v228
    %v275 = vunpack.c.h.b16 %v228
    %v276 = vunpack.c.l.b16 %v229
    %v277 = vunpack.c.h.b16 %v229
    %v278 = vpack.c.b16 %v248, %v246
    %v279 = vpack.c.b16 %v249, %v247
    %v280 = vpack.c.b16 %v252, %v250
    %v281 = vpack.c.b16 %v253, %v251
    %v282 = vpack.c.b16 %v256, %v254
    %v283 = vpack.c.b16 %v257, %v255
    %v284 = vpack.c.b16 %v260, %v258
    %v285 = vpack.c.b16 %v261, %v259
    %v286 = vpack.c.b16 %v264, %v262
    %v287 = vpack.c.b16 %v265, %v263
    %v288 = vpack.c.b16 %v268, %v266
    %v289 = vpack.c.b16 %v269, %v267
    %v290 = vpack.c.b16 %v272, %v270
    %v291 = vpack.c.b16 %v273, %v271
    %v292 = vpack.c.b16 %v276, %v274
    %v293 = vpack.c.b16 %v277, %v275
    %310 = vmatprep.subr.bf16.mxu0 %v279
    %311 = vmatpush1.bf16.msra.mxu0 %v278
    %312 = vmatprep.subr.bf16.mxu0 %v281
    %313 = vmatpush1.bf16.msra.mxu0 %v280
    %314 = vmatprep.subr.bf16.mxu0 %v283
    %315 = vmatpush1.bf16.msra.mxu0 %v282
    %316 = vmatprep.subr.bf16.mxu0 %v285
    %317 = vmatpush1.bf16.msra.mxu0 %v284
    %318 = vmatprep.subr.bf16.mxu0 %v287
    %319 = vmatpush1.bf16.msra.mxu0 %v286
    %320 = vmatprep.subr.bf16.mxu0 %v289
    %321 = vmatpush1.bf16.msra.mxu0 %v288
    %322 = vmatprep.subr.bf16.mxu0 %v291
    %323 = vmatpush1.bf16.msra.mxu0 %v290
    %324 = vmatprep.subr.bf16.mxu0 %v293
    %325 = vmatpush1.bf16.msra.mxu0 %v292
    %326 = vmatprep.subr.bf16.mxu0 0
    %327 = vmatpush1.bf16.msra.mxu0 0
    %328 = vmatprep.subr.bf16.mxu0 0
    %329 = vmatpush1.bf16.msra.mxu0 0
    %330 = vmatprep.subr.bf16.mxu0 0
    %331 = vmatpush1.bf16.msra.mxu0 0
    %332 = vmatprep.subr.bf16.mxu0 0
    %333 = vmatpush1.bf16.msra.mxu0 0
    %334 = vmatprep.subr.bf16.mxu0 0
    %335 = vmatpush1.bf16.msra.mxu0 0
    %336 = vmatprep.subr.bf16.mxu0 0
    %337 = vmatpush1.bf16.msra.mxu0 0
    %338 = vmatprep.subr.bf16.mxu0 0
    %339 = vmatpush1.bf16.msra.mxu0 0
    %340 = vmatprep.subr.bf16.mxu0 0
    %341 = vmatpush1.bf16.msra.mxu0 0
    %342 = vmatprep.mubr.bf16.mxu0 0
    %343 = vmatmul.mubr.bf16.gmra.mrb[0].mxu0 %v112
    %v344 = vpop.f32.mrb[0].mxu0
    %v345 = vadd.f32 0.0, %v344
    %v346 = vpop.f32.mrb[0].mxu0
    %v347 = vadd.f32 0.0, %v346
    %v348 = vpop.f32.mrb[0].mxu0
    %v349 = vadd.f32 0.0, %v348
    %v350 = vpop.f32.mrb[0].mxu0
    %v351 = vadd.f32 0.0, %v350
    %352 = vdwg.mxu0
    %v353 = vadd.f32 %v210, %v345
    %v354 = vadd.f32 %v211, %v347
    %v355 = vadd.f32 %v212, %v349
    %v356 = vadd.f32 %v213, %v351
    %v357 = vmax.f32 %v353, 0.0
    %v358 = vmax.f32 %v354, 0.0
    %v359 = vmax.f32 %v355, 0.0
    %v360 = vmax.f32 %v356, 0.0
    %v361 = vld [vmem:[%s6] sm:$0x3]
    %v363 = vlaneseq
    %v364 = vshrl.u32 %v363, 7
    %v365 = vsub.s32 0, %v364
    %v366 = vrot.slane %v361, %v365
    %v367 = vlaneseq
    %v368 = vshrl.u32 %v367, 7
    %v369 = vsub.s32 1, %v368
    %v370 = vrot.slane %v361, %v369
    %v373 = vmul.f32 %v357, %v366
    %v374 = vmul.f32 %v358, %v370
    %v375 = vmul.f32 %v359, %v366
    %v376 = vmul.f32 %v360, %v370
    %v377 = vadd.f32 %v373, %v374
    %378 = vadd.xlane.f32.xlu0 %v377
    %v379 = vpop.xlane.xlu0 %378
    %v380 = vadd.f32 %v375, %v376
    %381 = vadd.xlane.f32.xlu0 %v380
    %v382 = vpop.xlane.xlu0 %381
    %v383 = vld [vmem:[#allocation2] sm:$0x1]
    %v385 = vlaneseq
    %v386 = vshrl.u32 %v385, 7
    %v387 = vsub.s32 0, %v386
    %v388 = vrot.slane %v383, %v387
    %v390 = vadd.f32 %v379, %v388
    %v391 = vadd.f32 %v382, %v388
    %vm392 = vcmask 7168
    %393 = vst.msk [vmem:[%s8] sm:$0xff] %vm392, %v390
    %394 = vst.msk [vmem:[%s8 + $0x8] sm:$0xff] %vm392, %v391
    // Predicated region
    $region38: #{tpu_custom_call.1} parent=1 // pred_check
      _
    $region39: #{tpu_custom_call.1} parent=1 // pred_check_branch
      %396 = sbr.rel (0) target = $region41
    $region40: #{tpu_custom_call.1} parent=1 // pred_region
      _
    $region41: #{tpu_custom_call.1} parent=1 // pred_fallthru
      _
    // Predicated region
    $region42: #{tpu_custom_call.1} parent=1 // pred_check
      _
    $region43: #{tpu_custom_call.1} parent=1 // pred_check_branch
      %398 = sbr.rel (0) target = $region45
    $region44: #{tpu_custom_call.1} parent=1 // pred_region
      _
    $region45: #{tpu_custom_call.1} parent=1 // pred_fallthru
      _
    %399 = vsyncpa [#allocation4], 1

</llo_original>
